<compile_context>
chip_gen: v7x
topology: tpu7x:2x2x1
jax: 0.10.0
libtpu: 0.0.40
codegen_flags: <defaults>
</compile_context>

<pallas_src>
import math

import jax
import jax.numpy as jnp
from jax import lax
from jax.experimental import pallas as pl
from jax.experimental.pallas import tpu as pltpu


# ------------------------------- kernels ---------------------------------- #

def _pos_embed_bcast_kernel(x_ref, c_ref, out_ref):
    # x_ref:   (1, tn, 1)   position values for this (batch, position-tile)
    # c_ref:   (2, 1, F)    c[0] = 1/dim_t, c[1] = phase (0 / pi/2)
    # out_ref: (1, tn, F)
    c = c_ref[...]
    out_ref[...] = jnp.sin(x_ref[...] * c[0] + c[1])


def _pos_embed_packed_kernel(x_ref, e_ref, c_ref, out_ref):
    # Lane-dense path for F < 128: g = 128 // F positions per 128-lane output row.
    # x_ref:   (1, tn, gp)  g real position values per row (lanes g..gp-1 are zero padding)
    # e_ref:   (gp, 128)    one-hot expansion: E[j, l] = 1 iff l // F == j (j < g)
    # c_ref:   (2, 1, 128)  1/dim_t and phase, tiled g times along lanes
    # out_ref: (1, tn, 128)
    ang = jnp.dot(x_ref[0], e_ref[...],
                  precision=lax.Precision.HIGHEST,
                  preferred_element_type=jnp.float32)          # (tn, 128) on the (idle) MXU
    c = c_ref[...]
    out_ref[0] = jnp.sin(ang * c[0] + c[1])


# ----------------------------- tile selection ------------------------------ #

_MAX_BLOCK_BYTES = 8 * 1024 * 1024   # per output block; x2 double-buffer stays well under 32 MiB
_MAX_TILE_ROWS = 4096                # amortizes the ~0.35 us per-grid-step overhead
_MIN_GRID_STEPS = 4                  # >= 2 steps per TensorCore on v7x (2 TCs) + pipelining


def _round_up(x, m):
    return -(-x // m) * m


def _choose_tile_rows(rows, batch, lane_width):
    """Pick the position-tile (sublane) size: big, VMEM-safe, >=4 grid steps, no tiny tail."""
    bytes_per_row = lane_width * 4
    vmem_rows = max(8, (_MAX_BLOCK_BYTES // bytes_per_row) // 8 * 8)
    tn = min(_MAX_TILE_ROWS, vmem_rows, _round_up(rows, 8))
    # Guarantee enough grid steps for both v7x TensorCores and software pipelining.
    while tn > 8 and batch * (-(-rows // tn)) < _MIN_GRID_STEPS:
        tn = max(8, _round_up(tn // 2, 8))
    # Re-balance so the trailing block is not degenerate (e.g. a 1-row tail for N = 1025).
    num_tiles = -(-rows // tn)
    tn = max(8, _round_up(-(-rows // num_tiles), 8))
    return tn


# ------------------------------- module ------------------------------------ #

class PositionEmbeddingFixedSine1D:
    """JAX/Pallas port of PositionEmbeddingFixedSine_1D."""

    def __init__(self, num_pos_feats=128, temperature=10000, normalize=True, scale=None):
        self.num_pos_feats = num_pos_feats
        self.temperature = temperature
        self.normalize = normalize
        if scale is not None and normalize is False:
            raise ValueError("normalize should be True if scale is passed")
        if scale is None:
            scale = 2 * math.pi
        self.scale = float(scale)

    def _constants(self):
        F = self.num_pos_feats
        k = jnp.arange(F, dtype=jnp.int32)
        exponent = 2.0 * (k // 2).astype(jnp.float32) / float(F)
        dim_t = jnp.asarray(self.temperature, jnp.float32) ** exponent
        inv_dim_t = (1.0 / dim_t).astype(jnp.float32)                       # (F,)
        phase = jnp.where(k % 2 == 0, 0.0, math.pi / 2.0).astype(jnp.float32)
        return inv_dim_t, phase

    def __call__(self, num_positions, mask=None, batch_size=1):
        N = int(num_positions)
        F = self.num_pos_feats

        # ---- O(B*N) glue in the wrapper: ~mask, cumsum, normalize -------------------------
        if mask is None:
            # ~uint8(0) == 255; all rows identical -> compute one row, broadcast at the end.
            b_out = batch_size
            not_mask = jnp.full((1, N), 255.0, dtype=jnp.float32)
        else:
            mask = jnp.asarray(mask, dtype=jnp.uint8)
            b_out = mask.shape[0]
            not_mask = jnp.bitwise_not(mask).astype(jnp.float32)            # (B, N)
        b_k = not_mask.shape[0]

        x_embed = jnp.cumsum(not_mask, axis=1)                              # (b_k, N)
        if self.normalize:
            eps = 1e-6
            x_embed = x_embed / (x_embed[:, -1:] + eps) * self.scale

        inv_dim_t, phase = self._constants()

        compiler_params = pltpu.CompilerParams(
            dimension_semantics=("parallel", "parallel"),
            vmem_limit_bytes=32 * 1024 * 1024,
        )

        g = 128 // F if (0 < F < 128 and 128 % F == 0) else 1
        use_packed = g > 1 and (N % g == 0)

        if use_packed:
            # ---- lane-dense repack: g positions per 128-lane output row ----
            gp = max(8, g)                                                  # pad K of the tiny dot
            rows = N // g
            lane_w = 128

            x_grouped = x_embed.reshape(b_k, rows, g)
            if gp > g:
                x_grouped = jnp.pad(x_grouped, ((0, 0), (0, 0), (0, gp - g)))
            j_idx = jnp.arange(gp, dtype=jnp.int32)[:, None]
            lane_idx = jnp.arange(128, dtype=jnp.int32)[None, :]
            expand = ((lane_idx // F) == j_idx).astype(jnp.float32)         # (gp, 128) one-hot
            consts = jnp.stack([jnp.tile(inv_dim_t, g),
                                jnp.tile(phase, g)]).reshape(2, 1, 128)

            tn = _choose_tile_rows(rows, b_k, lane_w)
            grid = (b_k, pl.cdiv(rows, tn))

            pos = pl.pallas_call(
                _pos_embed_packed_kernel,
                out_shape=jax.ShapeDtypeStruct((b_k, rows, 128), jnp.float32),
                grid=grid,
                in_specs=[
                    pl.BlockSpec((1, tn, gp), lambda b, r: (b, r, 0)),
                    pl.BlockSpec((gp, 128), lambda b, r: (0, 0)),
                    pl.BlockSpec((2, 1, 128), lambda b, r: (0, 0, 0)),
                ],
                out_specs=pl.BlockSpec((1, tn, 128), lambda b, r: (b, r, 0)),
                compiler_params=compiler_params,
            )(x_grouped, expand, consts)
            pos = pos.reshape(b_k, N, F)                                    # contiguous: free reshape
        else:
            # ---- plain path: F lanes per row (lane-dense whenever F is a multiple of 128) ----
            x_in = x_embed[:, :, None]                                      # (b_k, N, 1)
            consts = jnp.stack([inv_dim_t, phase]).reshape(2, 1, F)

            tn = _choose_tile_rows(N, b_k, F)
            grid = (b_k, pl.cdiv(N, tn))

            pos = pl.pallas_call(
                _pos_embed_bcast_kernel,
                out_shape=jax.ShapeDtypeStruct((b_k, N, F), jnp.float32),
                grid=grid,
                in_specs=[
                    pl.BlockSpec((1, tn, 1), lambda b, n: (b, n, 0)),
                    pl.BlockSpec((2, 1, F), lambda b, n: (0, 0, 0)),
                ],
                out_specs=pl.BlockSpec((1, tn, F), lambda b, n: (b, n, 0)),
                compiler_params=compiler_params,
            )(x_in, consts)

        if mask is None and b_out != b_k:
            pos = jnp.broadcast_to(pos, (b_out, N, F))
        return pos


# ------------------------------ reference ---------------------------------- #

def _reference(num_positions, num_pos_feats, temperature, normalize, scale,
               mask=None, batch_size=1):
    """Pure-JAX transcription of the PyTorch forward (for validation)."""
    if scale is None:
        scale = 2 * math.pi
    if mask is None:
        mask = jnp.zeros((batch_size, num_positions), dtype=jnp.uint8)
    not_mask = jnp.bitwise_not(mask)
    x_embed = jnp.cumsum(not_mask.astype(jnp.float32), axis=1)
    if normalize:
        eps = 1e-6
        x_embed = x_embed / (x_embed[:, -1:] + eps) * scale
    dim_t = jnp.arange(num_pos_feats, dtype=jnp.float32)
    dim_t = temperature ** (2.0 * jnp.floor(dim_t / 2.0) / num_pos_feats)
    pos_x = x_embed[:, :, None] / dim_t
    pos = jnp.stack((jnp.sin(pos_x[:, :, 0::2]), jnp.cos(pos_x[:, :, 1::2])),
                    axis=3).reshape(mask.shape[0], num_positions, -1)
    return pos


if __name__ == "__main__":
    batch_size = 2
    num_positions = 16
    num_pos_feats = 32

    module = PositionEmbeddingFixedSine1D(num_pos_feats=num_pos_feats,
                                          temperature=10000, normalize=True)

    # Case 1: default mask (None) -- packed lane-dense path, B=1 kernel + broadcast.
    out_default = jax.block_until_ready(module(num_positions, mask=None,
                                               batch_size=batch_size))
    ref_default = _reference(num_positions, num_pos_feats, 10000, True, None,
                             mask=None, batch_size=batch_size)

    # Case 2: deterministic random uint8 mask -- packed path with a real batch.
    key = jax.random.PRNGKey(0)
    mask = jax.random.bernoulli(key, p=0.25,
                                shape=(batch_size, num_positions)).astype(jnp.uint8)
    out_masked = jax.block_until_ready(module(num_positions, mask=mask))
    ref_masked = _reference(num_positions, num_pos_feats, 10000, True, None, mask=mask)

    # Case 3: num_pos_feats = 128 -- naturally lane-dense broadcast path.
    module128 = PositionEmbeddingFixedSine1D(num_pos_feats=128, temperature=10000,
                                             normalize=True)
    out128 = jax.block_until_ready(module128(64, mask=None, batch_size=1))
    ref128 = _reference(64, 128, 10000, True, None, mask=None, batch_size=1)

    assert out_default.shape == (batch_size, num_positions, num_pos_feats)
    assert out_default.dtype == jnp.float32
    assert out_masked.shape == (batch_size, num_positions, num_pos_feats)
    assert out128.shape == (1, 64, 128)
    assert jnp.allclose(out_default, ref_default, atol=2e-4, rtol=2e-4)
    assert jnp.allclose(out_masked, ref_masked, atol=2e-4, rtol=2e-4)
    assert jnp.allclose(out128, ref128, atol=2e-4, rtol=2e-4)

    print("KERNEL_OK")
</pallas_src>

<mosaic_0001>
module attributes {stable_mosaic.version = 11 : i64} {
  func.func @_pos_embed_packed_kernel(%arg0: i32, %arg1: i32, %arg2: memref<1x8x8xf32, #tpu.memory_space<vmem>>, %arg3: memref<8x128xf32, #tpu.memory_space<vmem>>, %arg4: memref<2x1x128xf32, #tpu.memory_space<vmem>>, %arg5: memref<1x8x128xf32, #tpu.memory_space<vmem>>) attributes {dimension_semantics = [#tpu.dimension_semantics<parallel>, #tpu.dimension_semantics<parallel>], iteration_bounds = array<i64: 1, 1>, scalar_prefetch = 0 : i64, scratch_operands = 0 : i64, tpu.core_type = #tpu.core_type<tc>, window_params = [{transform_indices = @transform_0, window_bounds = array<i64: 1, 8, 8>}, {pipeline_mode = #tpu.pipeline_mode<synchronous>, transform_indices = @transform_1, window_bounds = array<i64: 8, 128>}, {pipeline_mode = #tpu.pipeline_mode<synchronous>, transform_indices = @transform_2, window_bounds = array<i64: 2, 1, 128>}, {transform_indices = @transform_3, window_bounds = array<i64: 1, 8, 128>}]} {
    %c0 = arith.constant 0 : index
    %c0_0 = arith.constant 0 : index
    %c0_1 = arith.constant 0 : index
    %0 = vector.load %arg2[%c0, %c0_0, %c0_1] : memref<1x8x8xf32, #tpu.memory_space<vmem>>, vector<1x8x8xf32>
    %1 = vector.shape_cast %0 : vector<1x8x8xf32> to vector<8x8xf32>
    %c0_2 = arith.constant 0 : index
    %c0_3 = arith.constant 0 : index
    %2 = vector.load %arg3[%c0_2, %c0_3] : memref<8x128xf32, #tpu.memory_space<vmem>>, vector<8x128xf32>
    %cst = arith.constant dense<0.000000e+00> : vector<8x128xf32>
    %3 = tpu.matmul %1, %2, %cst {dimension_numbers = #tpu.dot_dimension_numbers<[1], [0], [0], [1], [0, 0, 1, 1], [], []>, precision = #tpu.contract_precision<fp32>} : vector<8x8xf32>, vector<8x128xf32>, vector<8x128xf32> -> vector<8x128xf32>
    %c0_4 = arith.constant 0 : index
    %c0_5 = arith.constant 0 : index
    %c0_6 = arith.constant 0 : index
    %4 = vector.load %arg4[%c0_4, %c0_5, %c0_6] : memref<2x1x128xf32, #tpu.memory_space<vmem>>, vector<2x1x128xf32>
    %5 = vector.extract_strided_slice %4 {offsets = [0, 0, 0], sizes = [1, 1, 128], strides = [1, 1, 1]} : vector<2x1x128xf32> to vector<1x1x128xf32>
    %6 = vector.shape_cast %5 : vector<1x1x128xf32> to vector<1x128xf32>
    %7 = vector.broadcast %6 : vector<1x128xf32> to vector<8x128xf32>
    %8 = arith.mulf %3, %7 : vector<8x128xf32>
    %9 = vector.extract_strided_slice %4 {offsets = [1, 0, 0], sizes = [1, 1, 128], strides = [1, 1, 1]} : vector<2x1x128xf32> to vector<1x1x128xf32>
    %10 = vector.shape_cast %9 : vector<1x1x128xf32> to vector<1x128xf32>
    %11 = vector.broadcast %10 : vector<1x128xf32> to vector<8x128xf32>
    %12 = arith.addf %8, %11 : vector<8x128xf32>
    %13 = math.sin %12 : vector<8x128xf32>
    %c0_7 = arith.constant 0 : index
    %c0_8 = arith.constant 0 : index
    %c0_9 = arith.constant 0 : index
    %14 = vector.load %arg5[%c0_7, %c0_8, %c0_9] : memref<1x8x128xf32, #tpu.memory_space<vmem>>, vector<1x8x128xf32>
    %15 = vector.shape_cast %14 : vector<1x8x128xf32> to vector<8x128xf32>
    %16 = vector.shape_cast %13 : vector<8x128xf32> to vector<1x8x128xf32>
    tpu.vector_store %arg5[%c0_7, %c0_8, %c0_9], %16 {strides = array<i32>} : memref<1x8x128xf32, #tpu.memory_space<vmem>>, vector<1x8x128xf32>,
    return
  }
  func.func @transform_0(%arg0: i32, %arg1: i32) -> (i32, i32, i32) {
    %c0_i32 = arith.constant 0 : i32
    %c0_i32_0 = arith.constant 0 : i32
    return %arg0, %arg1, %c0_i32 : i32, i32, i32
  }
  func.func @transform_1(%arg0: i32, %arg1: i32) -> (i32, i32) {
    %c0_i32 = arith.constant 0 : i32
    %c0_i32_0 = arith.constant 0 : i32
    %c0_i32_1 = arith.constant 0 : i32
    return %c0_i32, %c0_i32_0 : i32, i32
  }
  func.func @transform_2(%arg0: i32, %arg1: i32) -> (i32, i32, i32) {
    %c0_i32 = arith.constant 0 : i32
    %c0_i32_0 = arith.constant 0 : i32
    %c0_i32_1 = arith.constant 0 : i32
    %c0_i32_2 = arith.constant 0 : i32
    return %c0_i32, %c0_i32_0, %c0_i32_1 : i32, i32, i32
  }
  func.func @transform_3(%arg0: i32, %arg1: i32) -> (i32, i32, i32) {
    %c0_i32 = arith.constant 0 : i32
    %c0_i32_0 = arith.constant 0 : i32
    return %arg0, %arg1, %c0_i32 : i32, i32, i32
  }
}

</mosaic_0001>

<llo_original>
// kernel: tpu_custom_call.1
$region0: #{tpu_custom_call.1}
  #allocation0 [shape = 'u32[]', space=smem, size = 0x4, offset = 0x4, fixed_abs, tag = 'smem constant byte address 0x4 - core index']
  #allocation1 [shape = 'u32[144,128]{1,0:T(1,128)}', space=vmem, size = 0x12000, scoped, tag = 'internal scratch']
  %s0 = inlined_call_operand.hbm [shape: f32[1,4,8], index: 0, kind: input, shape index: {}]
  %s1 = inlined_call_operand.hbm [shape: f32[8,128], index: 1, kind: input, shape index: {}]
  %s2 = inlined_call_operand.vmem [shape: f32[2,1,128], index: 2, kind: input, shape index: {}]
  %s3 = inlined_call_operand.hbm [shape: f32[1,4,128], index: 3, kind: output, shape index: {}]
  %s4 = sld [smem:[#allocation0]]
  $region30: #{tpu_custom_call.1} parent=0
    _
  %s6 = ssub.s32 1, %s4
  %s7 = scalar_select 0, %s6, %s4
  $region1: #{tpu_custom_call.1} parent=0
    #allocation2 [shape = 'u8[4096]{0}', space=vmem, size = 0x1000, scoped, tag = 'input window, operand 0, single buffered']
    #allocation3 [shape = 's32[1]{0}', space=sflag, size = 0x4, scoped, tag = 'scoped memory for tpu_custom_call.1']
    #allocation4 [shape = 's32[1]{0}', space=sflag, size = 0x4, scoped, tag = 'scoped memory for tpu_custom_call.1']
    #allocation5 [shape = 'u8[4096]{0}', space=vmem, size = 0x1000, scoped, tag = 'input window, operand 1, single buffered']
    #allocation6 [shape = 's32[1]{0}', space=sflag, size = 0x4, scoped, tag = 'scoped memory for tpu_custom_call.1']
    #allocation7 [shape = 'u8[4096]{0}', space=vmem, size = 0x1000, scoped, tag = 'output window, operand 0, single buffered']
    %8 = vsyncpa [#allocation3], 0
    %9 = vsyncpa [#allocation6], 0
    %10 = vsyncpa [#allocation4], 0
    // Predicated region
    $region2: #{tpu_custom_call.1} parent=1 // pred_check
      _
    $region3: #{tpu_custom_call.1} parent=1 // pred_check_branch
      %12 = sbr.rel (0) target = $region5
    $region4: #{tpu_custom_call.1} parent=1 // pred_region
      %s14 = ssub.s32 128, 64
      %15 = vsyncadd [#allocation3], %s14
      %s16 = sshll.u32 [#allocation2], 4
      %s17 = int_to_ptr.vmem [resolvable:$true] %s16
      %22 = dma.hbm_to_vmem [thread:$0]  %s0, 64, %s17, [#allocation3], 64, 64, 4
    $region5: #{tpu_custom_call.1} parent=1 // pred_fallthru
      _
    // Predicated region
    $region6: #{tpu_custom_call.1} parent=1 // pred_check
      _
    $region7: #{tpu_custom_call.1} parent=1 // pred_check_branch
      %24 = sbr.rel (0) target = $region9
    $region8: #{tpu_custom_call.1} parent=1 // pred_region
      %s26 = ssub.s32 128, 128
      %27 = vsyncadd [#allocation6], %s26
      %s29 = sshll.u32 [#allocation5], 4
      %s30 = int_to_ptr.vmem [resolvable:$true] %s29
      %32 = dma.hbm_to_vmem [thread:$0]  %s1, 128, %s30, [#allocation6]
    $region9: #{tpu_custom_call.1} parent=1 // pred_fallthru
      _
    // Predicated region
    $region10: #{tpu_custom_call.1} parent=1 // pred_check
      _
    $region11: #{tpu_custom_call.1} parent=1 // pred_check_branch
      %34 = sbr.rel (0) target = $region13
    $region12: #{tpu_custom_call.1} parent=1 // pred_region
      _
    $region13: #{tpu_custom_call.1} parent=1 // pred_fallthru
      _
    // Predicated region
    $region14: #{tpu_custom_call.1} parent=1 // pred_check
      _
    $region15: #{tpu_custom_call.1} parent=1 // pred_check_branch
      %36 = sbr.rel (0) target = $region17
    $region16: #{tpu_custom_call.1} parent=1 // pred_region
      %37 = dma.done [#allocation3], 128
    $region17: #{tpu_custom_call.1} parent=1 // pred_fallthru
      _
    // Predicated region
    $region18: #{tpu_custom_call.1} parent=1 // pred_check
      _
    $region19: #{tpu_custom_call.1} parent=1 // pred_check_branch
      %39 = sbr.rel (0) target = $region21
    $region20: #{tpu_custom_call.1} parent=1 // pred_region
      %40 = dma.done [#allocation6], 128
    $region21: #{tpu_custom_call.1} parent=1 // pred_fallthru
      _
    %v41 = vld [vmem:[#allocation2] sm:$0xff]
    %v42 = vld [vmem:[#allocation5] sm:$0xff]
    %vm43 = vcmask 64512
    %v45 = vsel %vm43, %v41, 0
    %47 = vmatprep.subr.mxu0 0.0
    %v48 = vand.u32 %v42, 4294901760
    %49 = vmatpush1.msra.mxu0 %v48
    %50 = vmatprep.subr.mxu0 0.0
    %51 = vmatpush1.msra.mxu0 0.0
    %52 = vmatprep.subr.mxu0 0.0
    %53 = vmatpush1.msra.mxu0 0.0
    %54 = vmatprep.subr.mxu0 0.0
    %55 = vmatpush1.msra.mxu0 0.0
    %56 = vmatprep.subr.mxu0 0.0
    %57 = vmatpush1.msra.mxu0 0.0
    %58 = vmatprep.subr.mxu0 0.0
    %59 = vmatpush1.msra.mxu0 0.0
    %60 = vmatprep.subr.mxu0 0.0
    %61 = vmatpush1.msra.mxu0 0.0
    %62 = vmatprep.subr.mxu0 0.0
    %63 = vmatpush1.msra.mxu0 0.0
    %64 = vmatprep.subr.mxu0 0.0
    %65 = vmatpush1.msra.mxu0 0.0
    %66 = vmatprep.subr.mxu0 0.0
    %67 = vmatpush1.msra.mxu0 0.0
    %68 = vmatprep.subr.mxu0 0.0
    %69 = vmatpush1.msra.mxu0 0.0
    %70 = vmatprep.subr.mxu0 0.0
    %71 = vmatpush1.msra.mxu0 0.0
    %72 = vmatprep.subr.mxu0 0.0
    %73 = vmatpush1.msra.mxu0 0.0
    %74 = vmatprep.subr.mxu0 0.0
    %75 = vmatpush1.msra.mxu0 0.0
    %76 = vmatprep.subr.mxu0 0.0
    %77 = vmatpush1.msra.mxu0 0.0
    %78 = vmatprep.subr.mxu0 0.0
    %79 = vmatpush1.msra.mxu0 0.0
    %80 = vmatprep.subr.mxu0 0.0
    %81 = vmatpush1.msra.mxu0 0.0
    %82 = vmatprep.subr.mxu0 0.0
    %83 = vmatpush1.msra.mxu0 0.0
    %84 = vmatprep.subr.mxu0 0.0
    %85 = vmatpush1.msra.mxu0 0.0
    %86 = vmatprep.subr.mxu0 0.0
    %87 = vmatpush1.msra.mxu0 0.0
    %88 = vmatprep.subr.mxu0 0.0
    %89 = vmatpush1.msra.mxu0 0.0
    %90 = vmatprep.subr.mxu0 0.0
    %91 = vmatpush1.msra.mxu0 0.0
    %92 = vmatprep.subr.mxu0 0.0
    %93 = vmatpush1.msra.mxu0 0.0
    %94 = vmatprep.subr.mxu0 0.0
    %95 = vmatpush1.msra.mxu0 0.0
    %96 = vmatprep.subr.mxu0 0.0
    %97 = vmatpush1.msra.mxu0 0.0
    %98 = vmatprep.subr.mxu0 0.0
    %99 = vmatpush1.msra.mxu0 0.0
    %100 = vmatprep.subr.mxu0 0.0
    %101 = vmatpush1.msra.mxu0 0.0
    %102 = vmatprep.subr.mxu0 0.0
    %103 = vmatpush1.msra.mxu0 0.0
    %104 = vmatprep.subr.mxu0 0.0
    %105 = vmatpush1.msra.mxu0 0.0
    %106 = vmatprep.subr.mxu0 0.0
    %107 = vmatpush1.msra.mxu0 0.0
    %108 = vmatprep.subr.mxu0 0.0
    %109 = vmatpush1.msra.mxu0 0.0
    %110 = vmatprep.subr.mxu0 0.0
    %111 = vmatpush1.msra.mxu0 0.0
    %112 = vmatprep.mubr.f32.mxu0 0.0
    %v113 = vand.u32 %v45, 4294901760
    %v114 = vsub.f32 %v45, %v113
    %v115 = vand.u32 %v114, 4294901760
    %v116 = vsub.f32 %v114, %v115
    %v117 = vand.u32 %v116, 4294901760
    %118 = vmatmul.mubr.f32.gmra.mrb[0].mxu0 %v117
    %v119 = vpop.f32.mrb[0].mxu0
    %v120 = vadd.f32 0.0, %v119
    %v121 = vpop.f32.mrb[0].mxu0
    %122 = vdwg.mxu0
    %123 = vmatprep.subr.mxu0 0.0
    %v124 = vand.u32 %v42, 4294901760
    %v125 = vsub.f32 %v42, %v124
    %v126 = vand.u32 %v125, 4294901760
    %v127 = vsub.f32 %v125, %v126
    %v128 = vand.u32 %v127, 4294901760
    %129 = vmatpush1.msra.mxu0 %v128
    %130 = vmatprep.subr.mxu0 0.0
    %131 = vmatpush1.msra.mxu0 0.0
    %132 = vmatprep.subr.mxu0 0.0
    %133 = vmatpush1.msra.mxu0 0.0
    %134 = vmatprep.subr.mxu0 0.0
    %135 = vmatpush1.msra.mxu0 0.0
    %136 = vmatprep.subr.mxu0 0.0
    %137 = vmatpush1.msra.mxu0 0.0
    %138 = vmatprep.subr.mxu0 0.0
    %139 = vmatpush1.msra.mxu0 0.0
    %140 = vmatprep.subr.mxu0 0.0
    %141 = vmatpush1.msra.mxu0 0.0
    %142 = vmatprep.subr.mxu0 0.0
    %143 = vmatpush1.msra.mxu0 0.0
    %144 = vmatprep.subr.mxu0 0.0
    %145 = vmatpush1.msra.mxu0 0.0
    %146 = vmatprep.subr.mxu0 0.0
    %147 = vmatpush1.msra.mxu0 0.0
    %148 = vmatprep.subr.mxu0 0.0
    %149 = vmatpush1.msra.mxu0 0.0
    %150 = vmatprep.subr.mxu0 0.0
    %151 = vmatpush1.msra.mxu0 0.0
    %152 = vmatprep.subr.mxu0 0.0
    %153 = vmatpush1.msra.mxu0 0.0
    %154 = vmatprep.subr.mxu0 0.0
    %155 = vmatpush1.msra.mxu0 0.0
    %156 = vmatprep.subr.mxu0 0.0
    %157 = vmatpush1.msra.mxu0 0.0
    %158 = vmatprep.subr.mxu0 0.0
    %159 = vmatpush1.msra.mxu0 0.0
    %160 = vmatprep.subr.mxu0 0.0
    %161 = vmatpush1.msra.mxu0 0.0
    %162 = vmatprep.subr.mxu0 0.0
    %163 = vmatpush1.msra.mxu0 0.0
    %164 = vmatprep.subr.mxu0 0.0
    %165 = vmatpush1.msra.mxu0 0.0
    %166 = vmatprep.subr.mxu0 0.0
    %167 = vmatpush1.msra.mxu0 0.0
    %168 = vmatprep.subr.mxu0 0.0
    %169 = vmatpush1.msra.mxu0 0.0
    %170 = vmatprep.subr.mxu0 0.0
    %171 = vmatpush1.msra.mxu0 0.0
    %172 = vmatprep.subr.mxu0 0.0
    %173 = vmatpush1.msra.mxu0 0.0
    %174 = vmatprep.subr.mxu0 0.0
    %175 = vmatpush1.msra.mxu0 0.0
    %176 = vmatprep.subr.mxu0 0.0
    %177 = vmatpush1.msra.mxu0 0.0
    %178 = vmatprep.subr.mxu0 0.0
    %179 = vmatpush1.msra.mxu0 0.0
    %180 = vmatprep.subr.mxu0 0.0
    %181 = vmatpush1.msra.mxu0 0.0
    %182 = vmatprep.subr.mxu0 0.0
    %183 = vmatpush1.msra.mxu0 0.0
    %184 = vmatprep.subr.mxu0 0.0
    %185 = vmatpush1.msra.mxu0 0.0
    %186 = vmatprep.subr.mxu0 0.0
    %187 = vmatpush1.msra.mxu0 0.0
    %188 = vmatprep.subr.mxu0 0.0
    %189 = vmatpush1.msra.mxu0 0.0
    %190 = vmatprep.subr.mxu0 0.0
    %191 = vmatpush1.msra.mxu0 0.0
    %192 = vmatprep.mubr.f32.mxu0 0.0
    %v193 = vand.u32 %v45, 4294901760
    %194 = vmatmul.mubr.f32.gmra.mrb[0].mxu0 %v193
    %v195 = vpop.f32.mrb[0].mxu0
    %v196 = vadd.f32 %v120, %v195
    %v197 = vpop.f32.mrb[0].mxu0
    %198 = vdwg.mxu0
    %199 = vmatprep.subr.mxu0 0.0
    %v200 = vand.u32 %v42, 4294901760
    %v201 = vsub.f32 %v42, %v200
    %202 = vmatpush1.msra.mxu0 %v201
    %203 = vmatprep.subr.mxu0 0.0
    %204 = vmatpush1.msra.mxu0 0.0
    %205 = vmatprep.subr.mxu0 0.0
    %206 = vmatpush1.msra.mxu0 0.0
    %207 = vmatprep.subr.mxu0 0.0
    %208 = vmatpush1.msra.mxu0 0.0
    %209 = vmatprep.subr.mxu0 0.0
    %210 = vmatpush1.msra.mxu0 0.0
    %211 = vmatprep.subr.mxu0 0.0
    %212 = vmatpush1.msra.mxu0 0.0
    %213 = vmatprep.subr.mxu0 0.0
    %214 = vmatpush1.msra.mxu0 0.0
    %215 = vmatprep.subr.mxu0 0.0
    %216 = vmatpush1.msra.mxu0 0.0
    %217 = vmatprep.subr.mxu0 0.0
    %218 = vmatpush1.msra.mxu0 0.0
    %219 = vmatprep.subr.mxu0 0.0
    %220 = vmatpush1.msra.mxu0 0.0
    %221 = vmatprep.subr.mxu0 0.0
    %222 = vmatpush1.msra.mxu0 0.0
    %223 = vmatprep.subr.mxu0 0.0
    %224 = vmatpush1.msra.mxu0 0.0
    %225 = vmatprep.subr.mxu0 0.0
    %226 = vmatpush1.msra.mxu0 0.0
    %227 = vmatprep.subr.mxu0 0.0
    %228 = vmatpush1.msra.mxu0 0.0
    %229 = vmatprep.subr.mxu0 0.0
    %230 = vmatpush1.msra.mxu0 0.0
    %231 = vmatprep.subr.mxu0 0.0
    %232 = vmatpush1.msra.mxu0 0.0
    %233 = vmatprep.subr.mxu0 0.0
    %234 = vmatpush1.msra.mxu0 0.0
    %235 = vmatprep.subr.mxu0 0.0
    %236 = vmatpush1.msra.mxu0 0.0
    %237 = vmatprep.subr.mxu0 0.0
    %238 = vmatpush1.msra.mxu0 0.0
    %239 = vmatprep.subr.mxu0 0.0
    %240 = vmatpush1.msra.mxu0 0.0
    %241 = vmatprep.subr.mxu0 0.0
    %242 = vmatpush1.msra.mxu0 0.0
    %243 = vmatprep.subr.mxu0 0.0
    %244 = vmatpush1.msra.mxu0 0.0
    %245 = vmatprep.subr.mxu0 0.0
    %246 = vmatpush1.msra.mxu0 0.0
    %247 = vmatprep.subr.mxu0 0.0
    %248 = vmatpush1.msra.mxu0 0.0
    %249 = vmatprep.subr.mxu0 0.0
    %250 = vmatpush1.msra.mxu0 0.0
    %251 = vmatprep.subr.mxu0 0.0
    %252 = vmatpush1.msra.mxu0 0.0
    %253 = vmatprep.subr.mxu0 0.0
    %254 = vmatpush1.msra.mxu0 0.0
    %255 = vmatprep.subr.mxu0 0.0
    %256 = vmatpush1.msra.mxu0 0.0
    %257 = vmatprep.subr.mxu0 0.0
    %258 = vmatpush1.msra.mxu0 0.0
    %259 = vmatprep.subr.mxu0 0.0
    %260 = vmatpush1.msra.mxu0 0.0
    %261 = vmatprep.subr.mxu0 0.0
    %262 = vmatpush1.msra.mxu0 0.0
    %263 = vmatprep.subr.mxu0 0.0
    %264 = vmatpush1.msra.mxu0 0.0
    %265 = vmatprep.mubr.f32.mxu0 0.0
    %v266 = vand.u32 %v45, 4294901760
    %v267 = vsub.f32 %v45, %v266
    %268 = vmatmul.mubr.f32.gmra.mrb[0].mxu0 %v267
    %v269 = vpop.f32.mrb[0].mxu0
    %v270 = vadd.f32 %v196, %v269
    %v271 = vpop.f32.mrb[0].mxu0
    %272 = vdwg.mxu0
    %273 = vmatprep.subr.mxu0 0.0
    %v274 = vand.u32 %v42, 4294901760
    %275 = vmatpush1.msra.mxu0 %v274
    %276 = vmatprep.subr.mxu0 0.0
    %277 = vmatpush1.msra.mxu0 0.0
    %278 = vmatprep.subr.mxu0 0.0
    %279 = vmatpush1.msra.mxu0 0.0
    %280 = vmatprep.subr.mxu0 0.0
    %281 = vmatpush1.msra.mxu0 0.0
    %282 = vmatprep.subr.mxu0 0.0
    %283 = vmatpush1.msra.mxu0 0.0
    %284 = vmatprep.subr.mxu0 0.0
    %285 = vmatpush1.msra.mxu0 0.0
    %286 = vmatprep.subr.mxu0 0.0
    %287 = vmatpush1.msra.mxu0 0.0
    %288 = vmatprep.subr.mxu0 0.0
    %289 = vmatpush1.msra.mxu0 0.0
    %290 = vmatprep.subr.mxu0 0.0
    %291 = vmatpush1.msra.mxu0 0.0
    %292 = vmatprep.subr.mxu0 0.0
    %293 = vmatpush1.msra.mxu0 0.0
    %294 = vmatprep.subr.mxu0 0.0
    %295 = vmatpush1.msra.mxu0 0.0
    %296 = vmatprep.subr.mxu0 0.0
    %297 = vmatpush1.msra.mxu0 0.0
    %298 = vmatprep.subr.mxu0 0.0
    %299 = vmatpush1.msra.mxu0 0.0
    %300 = vmatprep.subr.mxu0 0.0
    %301 = vmatpush1.msra.mxu0 0.0
    %302 = vmatprep.subr.mxu0 0.0
    %303 = vmatpush1.msra.mxu0 0.0
    %304 = vmatprep.subr.mxu0 0.0
    %305 = vmatpush1.msra.mxu0 0.0
    %306 = vmatprep.subr.mxu0 0.0
    %307 = vmatpush1.msra.mxu0 0.0
    %308 = vmatprep.subr.mxu0 0.0
    %309 = vmatpush1.msra.mxu0 0.0
    %310 = vmatprep.subr.mxu0 0.0
    %311 = vmatpush1.msra.mxu0 0.0
    %312 = vmatprep.subr.mxu0 0.0
    %313 = vmatpush1.msra.mxu0 0.0
    %314 = vmatprep.subr.mxu0 0.0
    %315 = vmatpush1.msra.mxu0 0.0
    %316 = vmatprep.subr.mxu0 0.0
    %317 = vmatpush1.msra.mxu0 0.0
    %318 = vmatprep.subr.mxu0 0.0
    %319 = vmatpush1.msra.mxu0 0.0
    %320 = vmatprep.subr.mxu0 0.0
    %321 = vmatpush1.msra.mxu0 0.0
    %322 = vmatprep.subr.mxu0 0.0
    %323 = vmatpush1.msra.mxu0 0.0
    %324 = vmatprep.subr.mxu0 0.0
    %325 = vmatpush1.msra.mxu0 0.0
    %326 = vmatprep.subr.mxu0 0.0
    %327 = vmatpush1.msra.mxu0 0.0
    %328 = vmatprep.subr.mxu0 0.0
    %329 = vmatpush1.msra.mxu0 0.0
    %330 = vmatprep.subr.mxu0 0.0
    %331 = vmatpush1.msra.mxu0 0.0
    %332 = vmatprep.subr.mxu0 0.0
    %333 = vmatpush1.msra.mxu0 0.0
    %334 = vmatprep.subr.mxu0 0.0
    %335 = vmatpush1.msra.mxu0 0.0
    %336 = vmatprep.subr.mxu0 0.0
    %337 = vmatpush1.msra.mxu0 0.0
    %338 = vmatprep.mubr.f32.mxu0 0.0
    %v339 = vand.u32 %v45, 4294901760
    %v340 = vsub.f32 %v45, %v339
    %v341 = vand.u32 %v340, 4294901760
    %342 = vmatmul.mubr.f32.gmra.mrb[0].mxu0 %v341
    %v343 = vpop.f32.mrb[0].mxu0
    %v344 = vadd.f32 %v270, %v343
    %v345 = vpop.f32.mrb[0].mxu0
    %346 = vdwg.mxu0
    %347 = vmatprep.subr.mxu0 0.0
    %v348 = vand.u32 %v42, 4294901760
    %v349 = vsub.f32 %v42, %v348
    %v350 = vand.u32 %v349, 4294901760
    %351 = vmatpush1.msra.mxu0 %v350
    %352 = vmatprep.subr.mxu0 0.0
    %353 = vmatpush1.msra.mxu0 0.0
    %354 = vmatprep.subr.mxu0 0.0
    %355 = vmatpush1.msra.mxu0 0.0
    %356 = vmatprep.subr.mxu0 0.0
    %357 = vmatpush1.msra.mxu0 0.0
    %358 = vmatprep.subr.mxu0 0.0
    %359 = vmatpush1.msra.mxu0 0.0
    %360 = vmatprep.subr.mxu0 0.0
    %361 = vmatpush1.msra.mxu0 0.0
    %362 = vmatprep.subr.mxu0 0.0
    %363 = vmatpush1.msra.mxu0 0.0
    %364 = vmatprep.subr.mxu0 0.0
    %365 = vmatpush1.msra.mxu0 0.0
    %366 = vmatprep.subr.mxu0 0.0
    %367 = vmatpush1.msra.mxu0 0.0
    %368 = vmatprep.subr.mxu0 0.0
    %369 = vmatpush1.msra.mxu0 0.0
    %370 = vmatprep.subr.mxu0 0.0
    %371 = vmatpush1.msra.mxu0 0.0
    %372 = vmatprep.subr.mxu0 0.0
    %373 = vmatpush1.msra.mxu0 0.0
    %374 = vmatprep.subr.mxu0 0.0
    %375 = vmatpush1.msra.mxu0 0.0
    %376 = vmatprep.subr.mxu0 0.0
    %377 = vmatpush1.msra.mxu0 0.0
    %378 = vmatprep.subr.mxu0 0.0
    %379 = vmatpush1.msra.mxu0 0.0
    %380 = vmatprep.subr.mxu0 0.0
    %381 = vmatpush1.msra.mxu0 0.0
    %382 = vmatprep.subr.mxu0 0.0
    %383 = vmatpush1.msra.mxu0 0.0
    %384 = vmatprep.subr.mxu0 0.0
    %385 = vmatpush1.msra.mxu0 0.0
    %386 = vmatprep.subr.mxu0 0.0
    %387 = vmatpush1.msra.mxu0 0.0
    %388 = vmatprep.subr.mxu0 0.0
    %389 = vmatpush1.msra.mxu0 0.0
    %390 = vmatprep.subr.mxu0 0.0
    %391 = vmatpush1.msra.mxu0 0.0
    %392 = vmatprep.subr.mxu0 0.0
    %393 = vmatpush1.msra.mxu0 0.0
    %394 = vmatprep.subr.mxu0 0.0
    %395 = vmatpush1.msra.mxu0 0.0
    %396 = vmatprep.subr.mxu0 0.0
    %397 = vmatpush1.msra.mxu0 0.0
    %398 = vmatprep.subr.mxu0 0.0
    %399 = vmatpush1.msra.mxu0 0.0
    %400 = vmatprep.subr.mxu0 0.0
    %401 = vmatpush1.msra.mxu0 0.0
    %402 = vmatprep.subr.mxu0 0.0
    %403 = vmatpush1.msra.mxu0 0.0
    %404 = vmatprep.subr.mxu0 0.0
    %405 = vmatpush1.msra.mxu0 0.0
    %406 = vmatprep.subr.mxu0 0.0
    %407 = vmatpush1.msra.mxu0 0.0
    %408 = vmatprep.subr.mxu0 0.0
    %409 = vmatpush1.msra.mxu0 0.0
    %410 = vmatprep.subr.mxu0 0.0
    %411 = vmatpush1.msra.mxu0 0.0
    %412 = vmatprep.subr.mxu0 0.0
    %413 = vmatpush1.msra.mxu0 0.0
    %414 = vmatprep.mubr.f32.mxu0 0.0
    %v415 = vand.u32 %v45, 4294901760
    %416 = vmatmul.mubr.f32.gmra.mrb[0].mxu0 %v415
    %v417 = vpop.f32.mrb[0].mxu0
    %v418 = vadd.f32 %v344, %v417
    %v419 = vpop.f32.mrb[0].mxu0
    %420 = vdwg.mxu0
    %421 = vmatprep.subr.mxu0 0.0
    %v422 = vand.u32 %v42, 4294901760
    %423 = vmatpush1.msra.mxu0 %v422
    %424 = vmatprep.subr.mxu0 0.0
    %425 = vmatpush1.msra.mxu0 0.0
    %426 = vmatprep.subr.mxu0 0.0
    %427 = vmatpush1.msra.mxu0 0.0
    %428 = vmatprep.subr.mxu0 0.0
    %429 = vmatpush1.msra.mxu0 0.0
    %430 = vmatprep.subr.mxu0 0.0
    %431 = vmatpush1.msra.mxu0 0.0
    %432 = vmatprep.subr.mxu0 0.0
    %433 = vmatpush1.msra.mxu0 0.0
    %434 = vmatprep.subr.mxu0 0.0
    %435 = vmatpush1.msra.mxu0 0.0
    %436 = vmatprep.subr.mxu0 0.0
    %437 = vmatpush1.msra.mxu0 0.0
    %438 = vmatprep.subr.mxu0 0.0
    %439 = vmatpush1.msra.mxu0 0.0
    %440 = vmatprep.subr.mxu0 0.0
    %441 = vmatpush1.msra.mxu0 0.0
    %442 = vmatprep.subr.mxu0 0.0
    %443 = vmatpush1.msra.mxu0 0.0
    %444 = vmatprep.subr.mxu0 0.0
    %445 = vmatpush1.msra.mxu0 0.0
    %446 = vmatprep.subr.mxu0 0.0
    %447 = vmatpush1.msra.mxu0 0.0
    %448 = vmatprep.subr.mxu0 0.0
    %449 = vmatpush1.msra.mxu0 0.0
    %450 = vmatprep.subr.mxu0 0.0
    %451 = vmatpush1.msra.mxu0 0.0
    %452 = vmatprep.subr.mxu0 0.0
    %453 = vmatpush1.msra.mxu0 0.0
    %454 = vmatprep.subr.mxu0 0.0
    %455 = vmatpush1.msra.mxu0 0.0
    %456 = vmatprep.subr.mxu0 0.0
    %457 = vmatpush1.msra.mxu0 0.0
    %458 = vmatprep.subr.mxu0 0.0
    %459 = vmatpush1.msra.mxu0 0.0
    %460 = vmatprep.subr.mxu0 0.0
    %461 = vmatpush1.msra.mxu0 0.0
    %462 = vmatprep.subr.mxu0 0.0
    %463 = vmatpush1.msra.mxu0 0.0
    %464 = vmatprep.subr.mxu0 0.0
    %465 = vmatpush1.msra.mxu0 0.0
    %466 = vmatprep.subr.mxu0 0.0
    %467 = vmatpush1.msra.mxu0 0.0
    %468 = vmatprep.subr.mxu0 0.0
    %469 = vmatpush1.msra.mxu0 0.0
    %470 = vmatprep.subr.mxu0 0.0
    %471 = vmatpush1.msra.mxu0 0.0
    %472 = vmatprep.subr.mxu0 0.0
    %473 = vmatpush1.msra.mxu0 0.0
    %474 = vmatprep.subr.mxu0 0.0
    %475 = vmatpush1.msra.mxu0 0.0
    %476 = vmatprep.subr.mxu0 0.0
    %477 = vmatpush1.msra.mxu0 0.0
    %478 = vmatprep.subr.mxu0 0.0
    %479 = vmatpush1.msra.mxu0 0.0
    %480 = vmatprep.subr.mxu0 0.0
    %481 = vmatpush1.msra.mxu0 0.0
    %482 = vmatprep.subr.mxu0 0.0
    %483 = vmatpush1.msra.mxu0 0.0
    %484 = vmatprep.subr.mxu0 0.0
    %485 = vmatpush1.msra.mxu0 0.0
    %486 = vmatprep.mubr.f32.mxu0 0.0
    %v487 = vand.u32 %v45, 4294901760
    %488 = vmatmul.mubr.f32.gmra.mrb[0].mxu0 %v487
    %v489 = vpop.f32.mrb[0].mxu0
    %v490 = vadd.f32 %v418, %v489
    %v491 = vpop.f32.mrb[0].mxu0
    %492 = vdwg.mxu0
    %v493 = vld [vmem:[%s2] sm:$0x1]
    %v494 = vld [vmem:[%s2 + $0x1] sm:$0x1]
    %v496 = vlaneseq
    %v497 = vshrl.u32 %v496, 7
    %v498 = vsub.s32 0, %v497
    %v499 = vrot.slane %v493, %v498
    %v501 = vmul.f32 %v490, %v499
    %v503 = vlaneseq
    %v504 = vshrl.u32 %v503, 7
    %v505 = vsub.s32 0, %v504
    %v506 = vrot.slane %v494, %v505
    %v508 = vadd.f32 %v501, %v506
    %v509 = vand.u32 2147483647, %v508
    %vm510 = vcmp.le.f32.partialorder %v509, 0.7853982
    %vm511 = vcmp.lt.s32.totalorder %v508, 0
    %v512 = vand.u32 %v508, 2139095040
    %v513 = vshrl.u32 %v512, 23
    %v514 = vsub.s32 %v513, 127
    %v515 = vand.u32 2147483647, %v508
    %v516 = vand.u32 %v515, 8388607
    %v517 = vor.u32 %v516, 8388608
    %v518 = vsub.s32 0, %v517
    %v519 = vadd.s32 %v514, 1
    %vm520 = vcmp.gt.s32.totalorder %v519, 0
    %v521 = vsel %vm520, %v519, 0
    %v522 = vshrl.u32 %v521, 5
    %v523 = vand.u32 %v521, 31
    %v524 = vsub.s32 32, %v523
    %v525 = vshrl.u32 683565275, %v524
    %v526 = vshll.u32 683565275, %v523
    %v527 = vshrl.u32 2475754826, %v524
    %v528 = vor.u32 %v526, %v527
    %v529 = vshll.u32 2475754826, %v523
    %v530 = vshrl.u32 2131351028, %v524
    %v531 = vor.u32 %v529, %v530
    %v532 = vshll.u32 2131351028, %v523
    %v533 = vshrl.u32 2102212464, %v524
    %v534 = vor.u32 %v532, %v533
    %v535 = vshll.u32 2102212464, %v523
    %v536 = vshrl.u32 920167782, %v524
    %v537 = vor.u32 %v535, %v536
    %v538 = vshll.u32 920167782, %v523
    %v539 = vshrl.u32 1326507024, %v524
    %v540 = vor.u32 %v538, %v539
    %vm541 = vcmp.lt.s32.totalorder %v522, 1
    %vm542 = vcmp.lt.s32.totalorder %v522, 2
    %vm543 = vcmp.lt.s32.totalorder %v522, 3
    %vm544 = vcmp.lt.s32.totalorder %v522, 4
    %v545 = vsel %vm541, %v525, %v528
    %v546 = vsel %vm544, %v534, 2102212464
    %v547 = vsel %vm543, %v531, %v546
    %v548 = vsel %vm542, %v545, %v547
    %v549 = vsel %vm541, %v528, %v531
    %v550 = vsel %vm544, %v537, 920167782
    %v551 = vsel %vm543, %v534, %v550
    %v552 = vsel %vm542, %v549, %v551
    %v553 = vsel %vm541, %v531, %v534
    %v554 = vsel %vm544, %v540, 1326507024
    %v555 = vsel %vm543, %v537, %v554
    %v556 = vsel %vm542, %v553, %v555
    %v557 = vshll.u32 %v517, 8
    %v558 = vmul.u32.u64.compose %v557, %v556
    %v559 = vextract.low.u32 %v558
    %v560 = vextract.high.u32 %v558
    %v561 = vmul.u32.u64.compose %v557, %v552
    %v562 = vextract.low.u32 %v561
    %v563 = vextract.high.u32 %v561
    %v564 = vmul.u32 %v557, %v548
    %v565 = vadd.s32 %v560, %v562
    %vm566 = vc.u32 %v560, %v562
    %v567 = vadd.s32 %v563, 1
    %v568 = vsel %vm566, %v567, %v563
    %v569 = vadd.s32 %v564, %v568
    %v570 = vadd.s32 %v569, 536870912
    %v571 = vshrl.u32 %v570, 30
    %v572 = vshll.u32 %v571, 30
    %v573 = vsub.s32 %v569, %v572
    %vm574 = vcmp.lt.s32.totalorder %v573, 0
    %v575 = vsub.s32 0, %v573
    %v576 = vsel %vm574, %v575, %v573
    %v577 = vclz %v576
    %v578 = vsub.s32 %v577, 2
    %vm579 = vcmp.gt.s32.totalorder 0, %v578
    %v580 = vsel %vm579, 0, %v578
    %v581 = vsub.s32 32, %v580
    %v582 = vshll.u32 %v573, %v580
    %v583 = vshrl.u32 %v565, %v581
    %v584 = vor.u32 %v582, %v583
    %v585 = vsub.s32 4294967266, %v580
    %v586 = vadd.s32 %v585, 127
    %v587 = vshll.u32 %v586, 23
    %v588 = vor.u32 4788187, %v587
    %v589 = vand.u32 2147483647, %v588
    %v591 = vcvt.s32.f32 %v584
    %v592 = vmul.f32 %v591, %v589
    %v593 = vxor.u32 %v592, 2147483648
    %v594 = vsel %vm511, %v593, %v592
    %v595 = vsub.s32 4, %v571
    %v596 = vsel %vm511, %v595, %v571
    %v597 = vsel %vm510, %v508, %v594
    %v598 = vsel %vm510, 0, %v596
    %v599 = vcosq.f32.pop %v597
    %v600 = vsinq.f32.pop %v597
    %vm601 = vweird.f32 %v508
    %v602 = vadd.s32 %v598, 3
    %v603 = vand.u32 %v602, 3
    %vm604 = vcmp.lt.s32.totalorder %v603, 2
    %vm605 = vcmp.eq.s32.totalorder %v603, 0
    %v606 = vxor.u32 %v600, 2147483648
    %v607 = vsel %vm605, %v599, %v606
    %vm608 = vcmp.eq.s32.totalorder %v603, 2
    %v609 = vxor.u32 %v599, 2147483648
    %v610 = vsel %vm608, %v609, %v600
    %v611 = vsel %vm604, %v607, %v610
    %v612 = vsel %vm601, nan, %v611
    %613 = vst [vmem:[#allocation7] sm:$0xff] %v612
    // Predicated region
    $region22: #{tpu_custom_call.1} parent=1 // pred_check
      _
    $region23: #{tpu_custom_call.1} parent=1 // pred_check_branch
      %615 = sbr.rel (0) target = $region25
    $region24: #{tpu_custom_call.1} parent=1 // pred_region
      %s617 = ssub.s32 128, 64
      %618 = vsyncadd [#allocation4], %s617
      %s619 = sshll.u32 [#allocation7], 4
      %s620 = int_to_ptr.vmem [resolvable:$true] %s619
      %625 = dma.vmem_to_hbm [thread:$0]  %s620, 64, %s3, [#allocation4], 64, 64, 4
    $region25: #{tpu_custom_call.1} parent=1 // pred_fallthru
      _
    // Predicated region
    $region26: #{tpu_custom_call.1} parent=1 // pred_check
      _
    $region27: #{tpu_custom_call.1} parent=1 // pred_check_branch
      %627 = sbr.rel (0) target = $region29
    $region28: #{tpu_custom_call.1} parent=1 // pred_region
      %628 = dma.done [#allocation4], 128
    $region29: #{tpu_custom_call.1} parent=1 // pred_fallthru
      _
    %629 = vsyncpa [#allocation3], 1
    %630 = vsyncpa [#allocation6], 1
    %631 = vsyncpa [#allocation4], 1

</llo_original>
